<compile_context>
chip_gen: v6e
topology: v6e:2x2x1
jax: 0.10.0
libtpu: 0.0.40
codegen_flags: <defaults>
</compile_context>

<pallas_src>
import functools

import jax
import jax.numpy as jnp
from jax import lax
from jax.experimental import pallas as pl
from jax.experimental.pallas import tpu as pltpu


def _opm_kernel_f32(a_ref, b_ref, o_ref, *, inv_s):
    """f32-output variant: accumulate directly in the resident output tile.

    a_ref: (1, TS, tm) VMEM tile of A     b_ref: (1, TS, tn) VMEM tile of B
    o_ref: (1, tm, tn) f32 output tile, resident across the seq grid axis.
    """
    s_idx = pl.program_id(3)

    @pl.when(s_idx == 0)
    def _():
        o_ref[...] = jnp.zeros_like(o_ref)

    # Contract over the seq axis (dim 0 of both operands): A_chunk^T @ B_chunk,
    # accumulated in f32 on the MXU without an explicit transpose.
    o_ref[0] += lax.dot_general(
        a_ref[0], b_ref[0],
        dimension_numbers=(((0,), (0,)), ((), ())),
        preferred_element_type=jnp.float32,
    )

    @pl.when(s_idx == pl.num_programs(3) - 1)
    def _():
        o_ref[...] = o_ref[...] * inv_s


def _opm_kernel_acc(a_ref, b_ref, o_ref, acc_ref, *, inv_s):
    """Narrow-output variant (bf16 etc.): accumulate in an f32 VMEM scratch."""
    s_idx = pl.program_id(3)

    @pl.when(s_idx == 0)
    def _():
        acc_ref[...] = jnp.zeros_like(acc_ref)

    acc_ref[...] += lax.dot_general(
        a_ref[0], b_ref[0],
        dimension_numbers=(((0,), (0,)), ((), ())),
        preferred_element_type=jnp.float32,
    )

    @pl.when(s_idx == pl.num_programs(3) - 1)
    def _():
        o_ref[0] = (acc_ref[...] * inv_s).astype(o_ref.dtype)


def _pick_mn_tile(dim):
    """Largest lane-friendly tile (multiple of 128) dividing dim, else the full dim."""
    for cand in (512, 256, 128):
        if dim % cand == 0:
            return cand
    return dim  # full dim == array dim is always a legal BlockSpec choice


def _pick_seq_tile(seq_len, sublane):
    """Largest divisor of S that is <= 512 and sublane-aligned, else full S."""
    if seq_len <= 512:
        return seq_len
    for cand in range(512, sublane - 1, -sublane):
        if seq_len % cand == 0:
            return cand
    return seq_len


def outer_product_mean(A, B, *, tm=None, tn=None, seq_tile=None):
    """Pallas TPU implementation of mean_s(a_si ⊗ b_sj) = (A^T @ B) / S per batch."""
    Batch, S, M = A.shape
    Batch2, S2, N = B.shape
    assert Batch == Batch2 and S == S2
    assert A.dtype == B.dtype

    itemsize = jnp.dtype(A.dtype).itemsize
    # sublane packing for the second-to-last block dim: f32 -> 8, bf16 -> 16, int8 -> 32
    sublane = 8 * max(1, 4 // itemsize)

    if tm is None:
        tm = _pick_mn_tile(M)
    if tn is None:
        tn = _pick_mn_tile(N)
    if seq_tile is None:
        seq_tile = _pick_seq_tile(S, sublane)

    # BlockSpec legality checks (last two dims: multiple of (sublane, 128) or full dim).
    assert M % tm == 0 and (tm == M or tm % 128 == 0), (M, tm)
    assert N % tn == 0 and (tn == N or tn % 128 == 0), (N, tn)
    assert S % seq_tile == 0 and (seq_tile == S or seq_tile % sublane == 0), (S, seq_tile)
    # TODO(synk): for intrinsically small N (<128) the output stores are lane-masked;
    # a wrapper-level pad/transpose to a lane-dense layout would change the output
    # layout contract, so it is intentionally not done here.

    n_m = M // tm
    n_n = N // tn
    n_s = S // seq_tile

    out_dtype = A.dtype
    acc_in_out = out_dtype == jnp.float32
    if acc_in_out:
        kernel = functools.partial(_opm_kernel_f32, inv_s=1.0 / S)
        scratch_shapes = []
        acc_bytes = 0
    else:
        kernel = functools.partial(_opm_kernel_acc, inv_s=1.0 / S)
        scratch_shapes = [pltpu.VMEM((tm, tn), jnp.float32)]
        acc_bytes = tm * tn * 4

    # Explicit VMEM budget with headroom, bounded well under v7x's 64 MiB physical.
    a_tile_b = seq_tile * tm * itemsize
    b_tile_b = seq_tile * tn * itemsize
    o_tile_b = tm * tn * itemsize
    needed = 2 * (a_tile_b + b_tile_b + o_tile_b) + acc_bytes
    vmem_limit = int(min(max(2 * needed, 32 << 20), 48 << 20))

    cost = pl.CostEstimate(
        flops=2 * Batch * S * M * N,
        transcendentals=0,
        # A re-read once per N-tile, B once per M-tile (classic tiled-matmul traffic).
        bytes_accessed=(Batch * S * M * itemsize) * n_n
        + (Batch * S * N * itemsize) * n_m
        + Batch * M * N * itemsize,
    )

    return pl.pallas_call(
        kernel,
        out_shape=jax.ShapeDtypeStruct((Batch, M, N), out_dtype),
        grid_spec=pltpu.PrefetchScalarGridSpec(
            num_scalar_prefetch=0,
            grid=(Batch, n_m, n_n, n_s),
            in_specs=[
                pl.BlockSpec((1, seq_tile, tm), lambda b, i, j, s: (b, s, i)),
                pl.BlockSpec((1, seq_tile, tn), lambda b, i, j, s: (b, s, j)),
            ],
            out_specs=pl.BlockSpec((1, tm, tn), lambda b, i, j, s: (b, i, j)),
            scratch_shapes=scratch_shapes,
        ),
        compiler_params=pltpu.CompilerParams(
            dimension_semantics=("parallel", "parallel", "parallel", "arbitrary"),
            vmem_limit_bytes=vmem_limit,
        ),
        cost_estimate=cost,
    )(A, B)


def _reference(A, B):
    # einsum('...sm,...sn->...smn').mean(-3)  ==  A^T @ B / S
    return jnp.einsum(
        "bsm,bsn->bmn", A.astype(jnp.float32), B.astype(jnp.float32)
    ) / A.shape[-2]


if __name__ == "__main__":
    key = jax.random.PRNGKey(0)
    k1, k2 = jax.random.split(key)

    Batch, S, M, N = 2, 64, 32, 48
    A = jax.random.normal(k1, (Batch, S, M), dtype=jnp.float32)
    B = jax.random.normal(k2, (Batch, S, N), dtype=jnp.float32)

    # f32 path (accumulate-in-output), with a 2-step seq reduction.
    out = outer_product_mean(A, B, seq_tile=32)
    out = jax.block_until_ready(out)
    ref = _reference(A, B)
    assert out.shape == (Batch, M, N)
    assert jnp.allclose(out, ref, atol=1e-5, rtol=1e-5)

    # bf16 path (f32 scratch accumulator, cast at finalize).
    A16 = A.astype(jnp.bfloat16)
    B16 = B.astype(jnp.bfloat16)
    out16 = jax.block_until_ready(outer_product_mean(A16, B16))
    ref16 = _reference(A16, B16)
    assert out16.shape == (Batch, M, N)
    assert jnp.allclose(out16.astype(jnp.float32), ref16, atol=2e-2, rtol=2e-2)

    print("KERNEL_OK")
</pallas_src>

<mosaic_0001>
module attributes {stable_mosaic.version = 11 : i64} {
  func.func @_opm_kernel_f32(%arg0: i32, %arg1: i32, %arg2: i32, %arg3: i32, %arg4: memref<1x32x32xf32, #tpu.memory_space<vmem>>, %arg5: memref<1x32x48xf32, #tpu.memory_space<vmem>>, %arg6: memref<1x32x48xf32, #tpu.memory_space<vmem>>) attributes {dimension_semantics = [#tpu.dimension_semantics<parallel>, #tpu.dimension_semantics<parallel>, #tpu.dimension_semantics<parallel>, #tpu.dimension_semantics<arbitrary>], iteration_bounds = array<i64: 2, 1, 1, 2>, scalar_prefetch = 0 : i64, scratch_operands = 0 : i64, tpu.core_type = #tpu.core_type<tc>, window_params = [{transform_indices = @transform_0, window_bounds = array<i64: 1, 32, 32>}, {transform_indices = @transform_1, window_bounds = array<i64: 1, 32, 48>}, {transform_indices = @transform_2, window_bounds = array<i64: 1, 32, 48>}]} {
    %c0_i32 = arith.constant 0 : i32
    %0 = arith.cmpi eq, %arg3, %c0_i32 : i32
    %1 = arith.extui %0 : i1 to i32
    %c0_i32_0 = arith.constant 0 : i32
    %2 = arith.cmpi ne, %1, %c0_i32_0 : i32
    scf.if %2 {
      %cst_13 = arith.constant 0.000000e+00 : f32
      %17 = vector.broadcast %cst_13 : f32 to vector<1x32x48xf32>
      %c0_14 = arith.constant 0 : index
      %c0_15 = arith.constant 0 : index
      %c0_16 = arith.constant 0 : index
      %18 = vector.load %arg6[%c0_14, %c0_15, %c0_16] : memref<1x32x48xf32, #tpu.memory_space<vmem>>, vector<1x32x48xf32>
      tpu.vector_store %arg6[%c0_14, %c0_15, %c0_16], %17 {strides = array<i32>} : memref<1x32x48xf32, #tpu.memory_space<vmem>>, vector<1x32x48xf32>,
    } else {
    }
    %c0 = arith.constant 0 : index
    %c0_1 = arith.constant 0 : index
    %c0_2 = arith.constant 0 : index
    %3 = vector.load %arg6[%c0, %c0_1, %c0_2] : memref<1x32x48xf32, #tpu.memory_space<vmem>>, vector<1x32x48xf32>
    %4 = vector.shape_cast %3 : vector<1x32x48xf32> to vector<32x48xf32>
    %c0_3 = arith.constant 0 : index
    %c0_4 = arith.constant 0 : index
    %c0_5 = arith.constant 0 : index
    %5 = vector.load %arg4[%c0_3, %c0_4, %c0_5] : memref<1x32x32xf32, #tpu.memory_space<vmem>>, vector<1x32x32xf32>
    %6 = vector.shape_cast %5 : vector<1x32x32xf32> to vector<32x32xf32>
    %c0_6 = arith.constant 0 : index
    %c0_7 = arith.constant 0 : index
    %c0_8 = arith.constant 0 : index
    %7 = vector.load %arg5[%c0_6, %c0_7, %c0_8] : memref<1x32x48xf32, #tpu.memory_space<vmem>>, vector<1x32x48xf32>
    %8 = vector.shape_cast %7 : vector<1x32x48xf32> to vector<32x48xf32>
    %cst = arith.constant dense<0.000000e+00> : vector<32x48xf32>
    %9 = tpu.matmul %6, %8, %cst {dimension_numbers = #tpu.dot_dimension_numbers<[0], [0], [1], [1], [0, 1, 1, 1], [], []>} : vector<32x32xf32>, vector<32x48xf32>, vector<32x48xf32> -> vector<32x48xf32>
    %10 = arith.addf %4, %9 : vector<32x48xf32>
    %c0_9 = arith.constant 0 : index
    %c0_10 = arith.constant 0 : index
    %c0_11 = arith.constant 0 : index
    %11 = vector.load %arg6[%c0_9, %c0_10, %c0_11] : memref<1x32x48xf32, #tpu.memory_space<vmem>>, vector<1x32x48xf32>
    %12 = vector.shape_cast %11 : vector<1x32x48xf32> to vector<32x48xf32>
    %13 = vector.shape_cast %10 : vector<32x48xf32> to vector<1x32x48xf32>
    tpu.vector_store %arg6[%c0_9, %c0_10, %c0_11], %13 {strides = array<i32>} : memref<1x32x48xf32, #tpu.memory_space<vmem>>, vector<1x32x48xf32>,
    %c1_i32 = arith.constant 1 : i32
    %14 = arith.cmpi eq, %arg3, %c1_i32 : i32
    %15 = arith.extui %14 : i1 to i32
    %c0_i32_12 = arith.constant 0 : i32
    %16 = arith.cmpi ne, %15, %c0_i32_12 : i32
    scf.if %16 {
      %c0_13 = arith.constant 0 : index
      %c0_14 = arith.constant 0 : index
      %c0_15 = arith.constant 0 : index
      %17 = vector.load %arg6[%c0_13, %c0_14, %c0_15] : memref<1x32x48xf32, #tpu.memory_space<vmem>>, vector<1x32x48xf32>
      %cst_16 = arith.constant 1.562500e-02 : f32
      %18 = vector.broadcast %cst_16 : f32 to vector<1x32x48xf32>
      %19 = arith.mulf %17, %18 : vector<1x32x48xf32>
      %c0_17 = arith.constant 0 : index
      %c0_18 = arith.constant 0 : index
      %c0_19 = arith.constant 0 : index
      %20 = vector.load %arg6[%c0_17, %c0_18, %c0_19] : memref<1x32x48xf32, #tpu.memory_space<vmem>>, vector<1x32x48xf32>
      tpu.vector_store %arg6[%c0_17, %c0_18, %c0_19], %19 {strides = array<i32>} : memref<1x32x48xf32, #tpu.memory_space<vmem>>, vector<1x32x48xf32>,
    } else {
    }
    return
  }
  func.func @transform_0(%arg0: i32, %arg1: i32, %arg2: i32, %arg3: i32) -> (i32, i32, i32) {
    %c0_i32 = arith.constant 0 : i32
    return %arg0, %arg3, %arg1 : i32, i32, i32
  }
  func.func @transform_1(%arg0: i32, %arg1: i32, %arg2: i32, %arg3: i32) -> (i32, i32, i32) {
    %c0_i32 = arith.constant 0 : i32
    return %arg0, %arg3, %arg2 : i32, i32, i32
  }
  func.func @transform_2(%arg0: i32, %arg1: i32, %arg2: i32, %arg3: i32) -> (i32, i32, i32) {
    %c0_i32 = arith.constant 0 : i32
    return %arg0, %arg1, %arg2 : i32, i32, i32
  }
}

</mosaic_0001>

<llo_original>
// kernel: tpu_custom_call.1
$region0: #{tpu_custom_call.1}
  #allocation0 [shape = 'u32[]', space=smem, size = 0x4, offset = 0x4, fixed_abs, tag = 'smem constant byte address 0x4 - core index']
  #allocation1 [shape = 'u32[144,128]{1,0:T(1,128)}', space=vmem, size = 0x12000, scoped, tag = 'internal scratch']
  %s0 = inlined_call_operand.vmem [shape: f32[2,64,32], index: 0, kind: input, shape index: {}]
  %s1 = inlined_call_operand.vmem [shape: f32[2,64,48], index: 1, kind: input, shape index: {}]
  %s2 = inlined_call_operand.hbm [shape: f32[2,32,48], index: 2, kind: output, shape index: {}]
  %s3 = sld [smem:[#allocation0]]
  $region49: #{tpu_custom_call.1} parent=0
    _
  %s5 = ssub.s32 1, %s3
  %s6 = scalar_select 0, %s5, %s3
  $region1: #{tpu_custom_call.1} parent=0
    #allocation2 [shape = 'u8[32768]{0}', space=vmem, size = 0x8000, scoped, tag = 'output window, operand 0']
    #allocation3 [shape = 's32[2]{0}', space=sflag, size = 0x8, scoped, tag = 'scoped memory for tpu_custom_call.1']
    %7 = vsyncpa [#allocation3], 0
    %s8 = scalar_lea.sflag [#allocation3], 1
    %9 = vsyncpa %s8, 0
    loop: start=0, step=1, limit=6
    $region2: #{tpu_custom_call.1} parent=1 // loop_pre_header
      _
    $region3: #{tpu_custom_call.1} parent=1 // loop_header
      %s11 = sphi 0, %s15
      %p12 = scmp.ge.s32.totalorder %s11, 6
      %s18 = sphi 0, %s44
      %s19 = sphi 0, %s40
      %s20 = sphi 0, %s36
      %s21 = sphi 0, %s32
      %s22 = sphi 0, %s18
      %s23 = sphi 0, %s19
      %s24 = sphi 0, %s20
      %s25 = sphi 0, %s21
      %s26 = sphi 0, %s22
      %s27 = sphi 0, %s23
      %s28 = sphi 0, %s24
      %s29 = sphi 0, %s25
      %s51 = sphi 0, %s53
      %s54 = sphi 0, %s51
      %s55 = sphi 0, %s54
      %s71 = sphi 0, %s55
      %s81 = sphi 0, %s83
      %s84 = sphi 0, %s81
      %s85 = sphi 0, %s84
      %s101 = sphi 0, %s85
      %s111 = sphi 0, %s113
      %s114 = sphi 0, %s111
      %s115 = sphi 0, %s114
      %s131 = sphi 0, %s115
    $region4: #{tpu_custom_call.1} parent=1 // loop_header_branch
      %14 = sbr.rel (%p12) target = $region8
    $region5: #{tpu_custom_call.1} parent=1 // loop_body
      %s16 = ssub.s32 %s11, 1
      %s17 = ssub.s32 %s11, 2
      %s30 = sadd.s32 1, %s21
      %p31 = scmp.ge.s32.totalorder %s30, 2
      %s32 = scalar_select %p31, 0, %s30
      %s33 = sadd.s32 1, %s20
      %s34 = scalar_select %p31, %s33, %s20
      %p35 = scmp.ge.s32.totalorder %s34, 1
      %s36 = scalar_select %p35, 0, %s34
      %s37 = sadd.s32 1, %s19
      %s38 = scalar_select %p35, %s37, %s19
      %p39 = scmp.ge.s32.totalorder %s38, 1
      %s40 = scalar_select %p39, 0, %s38
      %s41 = sadd.s32 1, %s18
      %s42 = scalar_select %p39, %s41, %s18
      %p43 = scmp.ge.s32.totalorder %s42, 2
      %s44 = scalar_select %p43, 0, %s42
      %s45 = ssub.s32 %s18, %s44
      %s46 = ssub.s32 %s21, %s32
      %s47 = sor.u32 %s45, %s46
      %s48 = ssub.s32 %s19, %s40
      %s49 = sor.u32 %s47, %s48
      %p50 = scmp.eq.s32.totalorder %s49, 0
      %s52 = sadd.s32 %s51, 1
      %s53 = scalar_select %p50, %s51, %s52
      %p56 = pneg %p50
      %p57 = scmp.eq.s32.totalorder %s11, 3
      %p58 = por %p56, %p57
      %p59 = scmp.ne.s32.totalorder %s51, %s54
      %p60 = scmp.eq.s32.totalorder %s11, 0
      %p61 = por %p59, %p60
      %p62 = scmp.ne.s32.totalorder %s51, %s54
      %p63 = scmp.eq.s32.totalorder %s16, 3
      %p64 = por %p62, %p63
      %p65 = scmp.ne.s32.totalorder %s54, %s55
      %p66 = scmp.eq.s32.totalorder %s16, 0
      %p67 = por %p65, %p66
      %p68 = scmp.ne.s32.totalorder %s54, %s55
      %p69 = scmp.eq.s32.totalorder %s17, 3
      %p70 = por %p68, %p69
      %p72 = scmp.ne.s32.totalorder %s55, %s71
      %p73 = scmp.eq.s32.totalorder %s17, 0
      %p74 = por %p72, %p73
      %s75 = ssub.s32 %s18, %s44
      %s76 = ssub.s32 %s21, %s32
      %s77 = sor.u32 %s75, %s76
      %s78 = ssub.s32 %s20, %s36
      %s79 = sor.u32 %s77, %s78
      %p80 = scmp.eq.s32.totalorder %s79, 0
      %s82 = sadd.s32 %s81, 1
      %s83 = scalar_select %p80, %s81, %s82
      %p86 = pneg %p80
      %p87 = scmp.eq.s32.totalorder %s11, 3
      %p88 = por %p86, %p87
      %p89 = scmp.ne.s32.totalorder %s81, %s84
      %p90 = scmp.eq.s32.totalorder %s11, 0
      %p91 = por %p89, %p90
      %p92 = scmp.ne.s32.totalorder %s81, %s84
      %p93 = scmp.eq.s32.totalorder %s16, 3
      %p94 = por %p92, %p93
      %p95 = scmp.ne.s32.totalorder %s84, %s85
      %p96 = scmp.eq.s32.totalorder %s16, 0
      %p97 = por %p95, %p96
      %p98 = scmp.ne.s32.totalorder %s84, %s85
      %p99 = scmp.eq.s32.totalorder %s17, 3
      %p100 = por %p98, %p99
      %p102 = scmp.ne.s32.totalorder %s85, %s101
      %p103 = scmp.eq.s32.totalorder %s17, 0
      %p104 = por %p102, %p103
      %s105 = ssub.s32 %s18, %s44
      %s106 = ssub.s32 %s19, %s40
      %s107 = sor.u32 %s105, %s106
      %s108 = ssub.s32 %s20, %s36
      %s109 = sor.u32 %s107, %s108
      %p110 = scmp.eq.s32.totalorder %s109, 0
      %s112 = sadd.s32 %s111, 1
      %s113 = scalar_select %p110, %s111, %s112
      %p116 = pneg %p110
      %p117 = scmp.eq.s32.totalorder %s11, 3
      %p118 = por %p116, %p117
      %p119 = scmp.ne.s32.totalorder %s111, %s114
      %p120 = scmp.eq.s32.totalorder %s11, 0
      %p121 = por %p119, %p120
      %p122 = scmp.ne.s32.totalorder %s111, %s114
      %p123 = scmp.eq.s32.totalorder %s16, 3
      %p124 = por %p122, %p123
      %p125 = scmp.ne.s32.totalorder %s114, %s115
      %p126 = scmp.eq.s32.totalorder %s16, 0
      %p127 = por %p125, %p126
      %p128 = scmp.ne.s32.totalorder %s114, %s115
      %p129 = scmp.eq.s32.totalorder %s17, 3
      %p130 = por %p128, %p129
      %p132 = scmp.ne.s32.totalorder %s115, %s131
      %p133 = scmp.eq.s32.totalorder %s17, 0
      %p134 = por %p132, %p133
      %p135 = scmp.le.s32.totalorder 1, %s11
      %p136 = scmp.lt.s32.totalorder %s11, 5
      %p137 = pnand %p135, %p136
      %p138 = pneg %p137
      // Predicated region
      $region9: #{tpu_custom_call.1} parent=5 // pred_check
        _
      $region10: #{tpu_custom_call.1} parent=5 // pred_check_branch
        %140 = sbr.rel (%p137) target = $region12
      $region11: #{tpu_custom_call.1} parent=5 // pred_region
        %s141 = ssub.s32 %s11, 1
      $region12: #{tpu_custom_call.1} parent=5 // pred_fallthru
        _
      %p142 = scmp.lt.s32.totalorder %s11, 4
      // Predicated region
      $region13: #{tpu_custom_call.1} parent=5 // pred_check
        %p143 = pneg %p142
      $region14: #{tpu_custom_call.1} parent=5 // pred_check_branch
        %145 = sbr.rel (%p143) target = $region16
      $region15: #{tpu_custom_call.1} parent=5 // pred_region
        // Predicated region
        $region17: #{tpu_custom_call.1} parent=15 // pred_check
          %p146 = pneg %p61
        $region18: #{tpu_custom_call.1} parent=15 // pred_check_branch
          %148 = sbr.rel (%p146) target = $region20
        $region19: #{tpu_custom_call.1} parent=15 // pred_region
          %s149 = smul.u32 4, %s21
          %p150 = scmp.lt.s32.totalorder %s18, 1
          %s151 = scalar_select %p150, %s18, 1
          %p152 = scmp.lt.s32.totalorder %s149, 7
          %s153 = scalar_select %p152, %s149, 7
          %p154 = scmp.lt.s32.totalorder %s19, 0
          %s155 = scalar_select %p154, %s19, 0
          %s156 = sadd.s32 %s155, %s153
          %s157 = smul.addr %s151, 8
          %s158 = sadd.s32 %s156, %s157
          %s159 = smul.addr %s158, 8
          %s160 = scalar_lea.vmem %s0, %s159
          %s161 = smul.u32 4, %s21
        $region20: #{tpu_custom_call.1} parent=15 // pred_fallthru
          _
        // Predicated region
        $region21: #{tpu_custom_call.1} parent=15 // pred_check
          %p162 = pneg %p91
        $region22: #{tpu_custom_call.1} parent=15 // pred_check_branch
          %164 = sbr.rel (%p162) target = $region24
        $region23: #{tpu_custom_call.1} parent=15 // pred_region
          %s165 = smul.u32 4, %s21
          %p166 = scmp.lt.s32.totalorder %s18, 1
          %s167 = scalar_select %p166, %s18, 1
          %p168 = scmp.lt.s32.totalorder %s165, 7
          %s169 = scalar_select %p168, %s165, 7
          %p170 = scmp.lt.s32.totalorder %s20, 0
          %s171 = scalar_select %p170, %s20, 0
          %s172 = sadd.s32 %s171, %s169
          %s173 = smul.addr %s167, 8
          %s174 = sadd.s32 %s172, %s173
          %s175 = smul.addr %s174, 8
          %s176 = scalar_lea.vmem %s1, %s175
          %s177 = smul.u32 4, %s21
        $region24: #{tpu_custom_call.1} parent=15 // pred_fallthru
          _
      $region16: #{tpu_custom_call.1} parent=5 // pred_fallthru
        _
      %p178 = scmp.le.s32.totalorder 1, %s11
      %p179 = scmp.lt.s32.totalorder %s11, 5
      %p180 = pnand %p178, %p179
      %p181 = pneg %p180
      // Predicated region
      $region25: #{tpu_custom_call.1} parent=5 // pred_check
        _
      $region26: #{tpu_custom_call.1} parent=5 // pred_check_branch
        %183 = sbr.rel (%p180) target = $region28
      $region27: #{tpu_custom_call.1} parent=5 // pred_region
        %s184 = ssub.s32 %s11, 1
        %s185 = smul.u32 4, %s25
        %p186 = scmp.lt.s32.totalorder %s22, 1
        %s187 = scalar_select %p186, %s22, 1
        %p188 = scmp.lt.s32.totalorder %s185, 7
        %s189 = scalar_select %p188, %s185, 7
        %p190 = scmp.lt.s32.totalorder %s23, 0
        %s191 = scalar_select %p190, %s23, 0
        %s192 = sadd.s32 %s191, %s189
        %s193 = smul.addr %s187, 8
        %s194 = sadd.s32 %s192, %s193
        %s195 = smul.addr %s194, 8
        %s196 = scalar_lea.vmem %s0, %s195
        %p197 = pneg %p67
        %p198 = pneg %p64
        %s199 = smul.u32 4, %s25
        %p200 = scmp.lt.s32.totalorder %s22, 1
        %s201 = scalar_select %p200, %s22, 1
        %p202 = scmp.lt.s32.totalorder %s199, 7
        %s203 = scalar_select %p202, %s199, 7
        %p204 = scmp.lt.s32.totalorder %s24, 0
        %s205 = scalar_select %p204, %s24, 0
        %s206 = sadd.s32 %s205, %s203
        %s207 = smul.addr %s201, 8
        %s208 = sadd.s32 %s206, %s207
        %s209 = smul.addr %s208, 8
        %s210 = scalar_lea.vmem %s1, %s209
        %p211 = pneg %p97
        %p212 = pneg %p94
        %p213 = pneg %p127
        %p214 = pneg %p124
        %s215 = sand.u32 %s114, 1
        %s216 = scalar_lea.sflag [#allocation3], %s215
        %s217 = sand.u32 %s114, 1
        %s218 = smul.addr %s217, 32
        %s219 = scalar_lea.vmem [#allocation2], %s218
        %s220 = smul.u32 4, %s25
        %p221 = scmp.lt.s32.totalorder %s22, 1
        %s222 = scalar_select %p221, %s22, 1
        %p223 = scmp.lt.s32.totalorder %s220, 7
        %s224 = scalar_select %p223, %s220, 7
        %p225 = scmp.lt.s32.totalorder %s23, 0
        %s226 = scalar_select %p225, %s23, 0
        %s227 = sadd.s32 %s226, %s224
        %s228 = smul.addr %s222, 8
        %s229 = sadd.s32 %s227, %s228
        %s230 = smul.addr %s229, 8
        %s231 = scalar_lea.vmem %s0, %s230
        %s232 = smul.u32 4, %s25
        %s233 = smul.u32 4, %s25
        %p234 = scmp.lt.s32.totalorder %s22, 1
        %s235 = scalar_select %p234, %s22, 1
        %p236 = scmp.lt.s32.totalorder %s233, 7
        %s237 = scalar_select %p236, %s233, 7
        %p238 = scmp.lt.s32.totalorder %s24, 0
        %s239 = scalar_select %p238, %s24, 0
        %s240 = sadd.s32 %s239, %s237
        %s241 = smul.addr %s235, 8
        %s242 = sadd.s32 %s240, %s241
        %s243 = smul.addr %s242, 8
        %s244 = scalar_lea.vmem %s1, %s243
        %s245 = smul.u32 4, %s25
        %s246 = smul.u32 4, %s23
        %p247 = scmp.eq.s32.totalorder %s25, 0
        // Predicated region
        $region29: #{tpu_custom_call.1} parent=27 // pred_check
          %p248 = pneg %p247
        $region30: #{tpu_custom_call.1} parent=27 // pred_check_branch
          %250 = sbr.rel (%p248) target = $region32
        $region31: #{tpu_custom_call.1} parent=27 // pred_region
          %vm251 = vcmask 392192
          %252 = vst.msk [vmem:[%s219] sm:$0xff] %vm251, 0.0
          %253 = vst.msk [vmem:[%s219 + $0x8] sm:$0xff] %vm251, 0.0
          %254 = vst.msk [vmem:[%s219 + $0x10] sm:$0xff] %vm251, 0.0
          %255 = vst.msk [vmem:[%s219 + $0x18] sm:$0xff] %vm251, 0.0
        $region32: #{tpu_custom_call.1} parent=27 // pred_fallthru
          _
        %v256 = vld [vmem:[%s219] sm:$0xff]
        %v257 = vld [vmem:[%s219 + $0x8] sm:$0xff]
        %v258 = vld [vmem:[%s219 + $0x10] sm:$0xff]
        %v259 = vld [vmem:[%s219 + $0x18] sm:$0xff]
        %v260 = vld [vmem:[%s231] sm:$0xff]
        %v261 = vld [vmem:[%s231 + $0x8] sm:$0xff]
        %v262 = vld [vmem:[%s231 + $0x10] sm:$0xff]
        %v263 = vld [vmem:[%s231 + $0x18] sm:$0xff]
        %v264 = vld [vmem:[%s244] sm:$0xff]
        %v265 = vld [vmem:[%s244 + $0x8] sm:$0xff]
        %v266 = vld [vmem:[%s244 + $0x10] sm:$0xff]
        %v267 = vld [vmem:[%s244 + $0x18] sm:$0xff]
        %268 = vxpose.xlu0.b32.start [1/16] %v260, 128
        %269 = vxpose.xlu0.b32.cont [2/16] %v261, 128
        %270 = vxpose.xlu0.b32.cont [3/16] %v262, 128
        %271 = vxpose.xlu0.b32.cont [4/16] %v263, 128
        %272 = vxpose.xlu0.b32.cont [5/16] 0.0, 128
        %273 = vxpose.xlu0.b32.cont [6/16] 0.0, 128
        %274 = vxpose.xlu0.b32.cont [7/16] 0.0, 128
        %275 = vxpose.xlu0.b32.cont [8/16] 0.0, 128
        %276 = vxpose.xlu0.b32.cont [9/16] 0.0, 128
        %277 = vxpose.xlu0.b32.cont [10/16] 0.0, 128
        %278 = vxpose.xlu0.b32.cont [11/16] 0.0, 128
        %279 = vxpose.xlu0.b32.cont [12/16] 0.0, 128
        %280 = vxpose.xlu0.b32.cont [13/16] 0.0, 128
        %281 = vxpose.xlu0.b32.cont [14/16] 0.0, 128
        %282 = vxpose.xlu0.b32.cont [15/16] 0.0, 128
        %283 = vxpose.xlu0.b32.end [16/16] 0.0, 128
        %v284 = vpop.trf.xlu0
        %v285 = vpop.trf.xlu0
        %v286 = vpop.trf.xlu0
        %v287 = vpop.trf.xlu0
        %v288 = vpop.trf.xlu0
        %v289 = vpop.trf.xlu0
        %v290 = vpop.trf.xlu0
        %v291 = vpop.trf.xlu0
        %v292 = vpop.trf.xlu0
        %v293 = vpop.trf.xlu0
        %v294 = vpop.trf.xlu0
        %v295 = vpop.trf.xlu0
        %v296 = vpop.trf.xlu0
        %v297 = vpop.trf.xlu0
        %v298 = vpop.trf.xlu0
        %v299 = vpop.trf.xlu0
        %vm300 = vcmask 261120
        %v302 = vsel %vm300, %v284, 0
        %v305 = vsel %vm300, %v285, 0
        %v308 = vsel %vm300, %v286, 0
        %v311 = vsel %vm300, %v287, 0
        %313 = vmatprep.subr.mxu0 0.0
        %314 = vmatpush1.msra.mxu0 0.0
        %315 = vmatprep.subr.mxu0 0.0
        %316 = vmatpush1.msra.mxu0 0.0
        %317 = vmatprep.subr.mxu0 0.0
        %318 = vmatpush1.msra.mxu0 0.0
        %319 = vmatprep.subr.mxu0 0.0
        %320 = vmatpush1.msra.mxu0 0.0
        %321 = vmatprep.subr.mxu0 0.0
        %322 = vmatpush1.msra.mxu0 0.0
        %323 = vmatprep.subr.mxu0 0.0
        %324 = vmatpush1.msra.mxu0 0.0
        %325 = vmatprep.subr.mxu0 0.0
        %326 = vmatpush1.msra.mxu0 0.0
        %327 = vmatprep.subr.mxu0 0.0
        %328 = vmatpush1.msra.mxu0 0.0
        %329 = vmatprep.subr.mxu0 0.0
        %330 = vmatpush1.msra.mxu0 0.0
        %331 = vmatprep.subr.mxu0 0.0
        %332 = vmatpush1.msra.mxu0 0.0
        %333 = vmatprep.subr.mxu0 0.0
        %334 = vmatpush1.msra.mxu0 0.0
        %335 = vmatprep.subr.mxu0 0.0
        %336 = vmatpush1.msra.mxu0 0.0
        %337 = vmatprep.subr.mxu0 0.0
        %338 = vmatpush1.msra.mxu0 %v267
        %339 = vmatprep.subr.mxu0 0.0
        %340 = vmatpush1.msra.mxu0 %v266
        %341 = vmatprep.subr.mxu0 0.0
        %342 = vmatpush1.msra.mxu0 %v265
        %343 = vmatprep.subr.mxu0 0.0
        %344 = vmatpush1.msra.mxu0 %v264
        %345 = vmatprep.subr.mxu0 0.0
        %346 = vmatpush2.msra.mxu0 0.0
        %347 = vmatprep.subr.mxu0 0.0
        %348 = vmatpush2.msra.mxu0 0.0
        %349 = vmatprep.subr.mxu0 0.0
        %350 = vmatpush2.msra.mxu0 0.0
        %351 = vmatprep.subr.mxu0 0.0
        %352 = vmatpush2.msra.mxu0 0.0
        %353 = vmatprep.subr.mxu0 0.0
        %354 = vmatpush2.msra.mxu0 0.0
        %355 = vmatprep.subr.mxu0 0.0
        %356 = vmatpush2.msra.mxu0 0.0
        %357 = vmatprep.subr.mxu0 0.0
        %358 = vmatpush2.msra.mxu0 0.0
        %359 = vmatprep.subr.mxu0 0.0
        %360 = vmatpush2.msra.mxu0 0.0
        %361 = vmatprep.subr.mxu0 0.0
        %362 = vmatpush2.msra.mxu0 0.0
        %363 = vmatprep.subr.mxu0 0.0
        %364 = vmatpush2.msra.mxu0 0.0
        %365 = vmatprep.subr.mxu0 0.0
        %366 = vmatpush2.msra.mxu0 0.0
        %367 = vmatprep.subr.mxu0 0.0
        %368 = vmatpush2.msra.mxu0 0.0
        %369 = vmatprep.subr.mxu0 0.0
        %370 = vmatpush2.msra.mxu0 0.0
        %371 = vmatprep.subr.mxu0 0.0
        %372 = vmatpush2.msra.mxu0 0.0
        %373 = vmatprep.subr.mxu0 0.0
        %374 = vmatpush2.msra.mxu0 0.0
        %375 = vmatprep.subr.mxu0 0.0
        %376 = vmatpush2.msra.mxu0 0.0
        %377 = vmatprep.mubr.f32.mxu0 0.0
        %378 = vmatmul.mubr.f32.gmra.mxu0 %v302
        %v379 = vpop.f32.mrf.mxu0
        %v380 = vadd.f32 0.0, %v379
        %v381 = vpop.f32.mrf.mxu0
        %382 = vmatprep.mubr.f32.mxu0 0.0
        %383 = vmatmul.mubr.f32.gmra.mxu0 %v305
        %v384 = vpop.f32.mrf.mxu0
        %v385 = vadd.f32 0.0, %v384
        %v386 = vpop.f32.mrf.mxu0
        %387 = vmatprep.mubr.f32.mxu0 0.0
        %388 = vmatmul.mubr.f32.gmra.mxu0 %v308
        %v389 = vpop.f32.mrf.mxu0
        %v390 = vadd.f32 0.0, %v389
        %v391 = vpop.f32.mrf.mxu0
        %392 = vmatprep.mubr.f32.mxu0 0.0
        %393 = vmatmul.mubr.f32.gmra.mxu0 %v311
        %v394 = vpop.f32.mrf.mxu0
        %v395 = vadd.f32 0.0, %v394
        %v396 = vpop.f32.mrf.mxu0
        %397 = vdwg.mxu0
        %v398 = vadd.f32 %v256, %v380
        %v399 = vadd.f32 %v257, %v385
        %v400 = vadd.f32 %v258, %v390
        %v401 = vadd.f32 %v259, %v395
        %vm402 = vcmask 392192
        %403 = vst.msk [vmem:[%s219] sm:$0xff] %vm402, %v398
        %404 = vst.msk [vmem:[%s219 + $0x8] sm:$0xff] %vm402, %v399
        %405 = vst.msk [vmem:[%s219 + $0x10] sm:$0xff] %vm402, %v400
        %406 = vst.msk [vmem:[%s219 + $0x18] sm:$0xff] %vm402, %v401
        %p407 = scmp.eq.s32.totalorder %s25, 1
        // Predicated region
        $region33: #{tpu_custom_call.1} parent=27 // pred_check
          %p408 = pneg %p407
        $region34: #{tpu_custom_call.1} parent=27 // pred_check_branch
          %410 = sbr.rel (%p408) target = $region36
        $region35: #{tpu_custom_call.1} parent=27 // pred_region
          %v411 = vld [vmem:[%s219] sm:$0xff]
          %v412 = vld [vmem:[%s219 + $0x8] sm:$0xff]
          %v413 = vld [vmem:[%s219 + $0x10] sm:$0xff]
          %v414 = vld [vmem:[%s219 + $0x18] sm:$0xff]
          %v415 = vmul.f32 %v411, 0.015625
          %v416 = vmul.f32 %v412, 0.015625
          %v417 = vmul.f32 %v413, 0.015625
          %v418 = vmul.f32 %v414, 0.015625
          %419 = vst.msk [vmem:[%s219] sm:$0xff] %vm402, %v415
          %420 = vst.msk [vmem:[%s219 + $0x8] sm:$0xff] %vm402, %v416
          %421 = vst.msk [vmem:[%s219 + $0x10] sm:$0xff] %vm402, %v417
          %422 = vst.msk [vmem:[%s219 + $0x18] sm:$0xff] %vm402, %v418
        $region36: #{tpu_custom_call.1} parent=27 // pred_fallthru
          _
        %s423 = sand.u32 %s114, 1
        %s424 = scalar_lea.sflag [#allocation3], %s423
        %s425 = sand.u32 %s114, 1
        %s426 = smul.addr %s425, 32
        %s427 = scalar_lea.vmem [#allocation2], %s426
        // Predicated region
        $region37: #{tpu_custom_call.1} parent=27 // pred_check
          %p428 = pneg %p124
        $region38: #{tpu_custom_call.1} parent=27 // pred_check_branch
          %430 = sbr.rel (%p428) target = $region40
        $region39: #{tpu_custom_call.1} parent=27 // pred_region
          %s431 = smul.u32 4, %s23
          %s433 = ssub.s32 512, 512
          %434 = vsyncadd %s424, %s433
          %s435 = sadd.s32 %s24, %s431
          %s436 = smul.addr %s22, 4
          %s437 = sadd.s32 %s435, %s436
          %s438 = smul.addr %s437, 128
          %s439 = scalar_lea.hbm %s2, %s438
          %s440 = sshll.u32 %s427, 4
          %s441 = int_to_ptr.vmem [resolvable:$true] %s440
          %446 = dma.vmem_to_hbm [thread:$0]  %s441, 512, %s439, %s424, 128, 128, 8
        $region40: #{tpu_custom_call.1} parent=27 // pred_fallthru
          _
      $region28: #{tpu_custom_call.1} parent=5 // pred_fallthru
        _
      %p447 = scmp.le.s32.totalorder 2, %s11
      // Predicated region
      $region41: #{tpu_custom_call.1} parent=5 // pred_check
        %p448 = pneg %p447
      $region42: #{tpu_custom_call.1} parent=5 // pred_check_branch
        %450 = sbr.rel (%p448) target = $region44
      $region43: #{tpu_custom_call.1} parent=5 // pred_region
        %s451 = ssub.s32 %s11, 2
        // Predicated region
        $region45: #{tpu_custom_call.1} parent=43 // pred_check
          %p452 = pneg %p130
        $region46: #{tpu_custom_call.1} parent=43 // pred_check_branch
          %454 = sbr.rel (%p452) target = $region48
        $region47: #{tpu_custom_call.1} parent=43 // pred_region
          %s455 = sand.u32 %s115, 1
          %s456 = scalar_lea.sflag [#allocation3], %s455
          %s457 = sand.u32 %s115, 1
          %s458 = smul.addr %s457, 32
          %s459 = scalar_lea.vmem [#allocation2], %s458
          %460 = dma.done %s456, 512
        $region48: #{tpu_custom_call.1} parent=43 // pred_fallthru
          _
      $region44: #{tpu_custom_call.1} parent=5 // pred_fallthru
        _
    $region6: #{tpu_custom_call.1} parent=1 // loop_footer
      %s15 = sadd.s32 1, %s11
    $region7: #{tpu_custom_call.1} parent=1 // loop_footer_branch
      %10 = sbr.rel target = $region3
    $region8: #{tpu_custom_call.1} parent=1 // loop_exit
      _
    %461 = vsyncpa [#allocation3], 1
    %s462 = scalar_lea.sflag [#allocation3], 1
    %463 = vsyncpa %s462, 1

</llo_original>
